<compile_context>
chip_gen: v5e
topology: v5e:2x2
jax: 0.10.0
libtpu: 0.0.40
codegen_flags: <defaults>
</compile_context>

<pallas_src>
import jax
import jax.numpy as jnp
from jax.experimental import pallas as pl
from jax.experimental.pallas import tpu as pltpu


def _round_up(a, b):
    return (a + b - 1) // b * b


def conv2d_pallas(x_nchw, weight_oihw, bias, *,
                  compute_dtype=jnp.bfloat16,
                  tile_m_target=512,
                  channels_last=False):
    """Conv2d(C -> OC, KHxKW, stride 1, no padding), PyTorch NCHW/OIHW layout."""
    N, C, H, W = x_nchw.shape
    OC, C2, KH, KW = weight_oihw.shape
    assert C2 == C
    OH, OW = H - KH + 1, W - KW + 1
    assert OH >= 1 and OW >= 1

    CP = 8                       # input channels padded 3 -> 8
    KC = KW * CP                 # 24 lanes per pixel after kernel-width replication
    MROWS = OH * W               # "wide" output rows; cols ow >= OW straddle a row
                                 # boundary (garbage) and are sliced off below.

    # ---- output-row tiling ---------------------------------------------------
    if MROWS <= tile_m_target:
        TILE_M = _round_up(MROWS, 8)
    else:
        TILE_M = tile_m_target
    assert TILE_M % 8 == 0
    MP = _round_up(MROWS, TILE_M)            # zero-padded output rows
    MTILES = MP // TILE_M

    # rows of the replicated image the kernel may touch: m*TILE_M + i*W + r
    R3P = _round_up(MP + (KH - 1) * W, 16)
    LP = R3P + (KW - 1)                      # flattened image rows incl. j-shift halo

    # static in-bounds guards (no runtime bounds check on VMEM refs)
    assert R3P >= MP + (KH - 1) * W, "kernel row slice would read OOB"
    assert LP >= H * W, "halo padding does not cover the image"
    assert MP % TILE_M == 0

    # ---- cheap XLA glue (KB-sized at these shapes) ---------------------------
    # NCHW -> flattened NHWC, zero-padded rows / channels
    x_flat = jnp.transpose(x_nchw, (0, 2, 3, 1)).reshape(N, H * W, C)
    x_flat = jnp.pad(x_flat, ((0, 0), (0, LP - H * W), (0, CP - C)))
    # replicate along kernel width:  x3[n, p, j*CP + c] = x[n, p + j, c]
    x3 = jnp.concatenate([x_flat[:, j:j + R3P, :] for j in range(KW)], axis=-1)
    x3 = x3.astype(compute_dtype)                               # (N, R3P, KC)

    # OIHW -> (KH, KW*CP, OC):  w3[i, j*CP + c, oc] = weight[oc, c, i, j]
    w3 = jnp.transpose(weight_oihw, (2, 3, 1, 0))               # (KH, KW, C, OC)
    w3 = jnp.pad(w3, ((0, 0), (0, 0), (0, CP - C), (0, 0)))
    w3 = w3.reshape(KH, KC, OC).astype(compute_dtype)

    b2 = bias.reshape(1, OC).astype(jnp.float32)

    def kernel(x_ref, w_ref, b_ref, o_ref):
        # x_ref: (1, R3P, KC)    kernel-width-replicated image (resident across m)
        # w_ref: (KH, KC, OC)    per-kernel-row weight slabs
        # b_ref: (1, OC)         bias (f32)
        # o_ref: (1, TILE_M, OC) 64 real channels only (halved writeback)
        base = pl.multiple_of(pl.program_id(1) * TILE_M, 8)
        # bias folded into the f32 accumulator init
        acc = jnp.broadcast_to(b_ref[...], (TILE_M, OC)).astype(jnp.float32)
        for i in range(KH):                         # KH=3 dots of K=KC=24, unrolled
            lhs = x_ref[0, pl.ds(base + i * W, TILE_M), :]      # (TILE_M, KC)
            acc = acc + jnp.dot(lhs, w_ref[i],
                                preferred_element_type=jnp.float32)
        o_ref[0] = acc.astype(o_ref.dtype)

    # VMEM budget: double-buffered input + output blocks + weights (+ headroom)
    LANE = 128
    in_itm = jnp.dtype(compute_dtype).itemsize
    est = (2 * R3P * LANE * in_itm             # x3 block (lane-padded worst case)
           + 2 * TILE_M * LANE * 4             # output block
           + KH * _round_up(KC, 8) * LANE * in_itm
           + 2 * TILE_M * LANE * 4)            # accumulator / spill headroom
    vmem_limit = int(min(max(4 * est, 32 * 1024 * 1024), 64 * 1024 * 1024))

    out = pl.pallas_call(
        kernel,
        out_shape=jax.ShapeDtypeStruct((N, MP, OC), jnp.float32),
        grid=(N, MTILES),
        in_specs=[
            pl.BlockSpec((1, R3P, KC), lambda n, m: (n, 0, 0)),
            pl.BlockSpec((KH, KC, OC), lambda n, m: (0, 0, 0)),
            pl.BlockSpec((1, OC), lambda n, m: (0, 0)),
        ],
        out_specs=pl.BlockSpec((1, TILE_M, OC), lambda n, m: (n, m, 0)),
        compiler_params=pltpu.CompilerParams(
            dimension_semantics=("parallel", "parallel"),   # megacore split on v7x
            vmem_limit_bytes=vmem_limit),
    )(x3, w3, b2)

    # (N, MP, 64) -> drop padded rows / garbage cols -> NHWC
    out = out[:, :MROWS, :].reshape(N, OH, W, OC)[:, :, :OW, :]
    if channels_last:
        return out                               # NHWC: skips the transpose pass
    return jnp.transpose(out, (0, 3, 1, 2))      # PyTorch NCHW


if __name__ == "__main__":
    key = jax.random.PRNGKey(0)
    kx, kw_, kb = jax.random.split(key, 3)

    # small shapes consistent with Conv2d(3, 64, kernel_size=3)
    N, C, H, W = 2, 3, 16, 16
    OC, KH, KW = 64, 3, 3

    x = jax.random.normal(kx, (N, C, H, W), dtype=jnp.float32)

    # deterministic init matching PyTorch's uniform(-1/sqrt(fan_in), 1/sqrt(fan_in))
    fan_in = C * KH * KW
    bound = 1.0 / (fan_in ** 0.5)
    weight = jax.random.uniform(kw_, (OC, C, KH, KW), jnp.float32, -bound, bound)
    bias = jax.random.uniform(kb, (OC,), jnp.float32, -bound, bound)

    # reference: XLA conv (f32)
    ref = jax.lax.conv_general_dilated(
        x, weight, window_strides=(1, 1), padding="VALID",
        dimension_numbers=("NCHW", "OIHW", "NCHW"),
    ) + bias.reshape(1, OC, 1, 1)

    # f32 compute path: bit-tight check
    conv_f32 = jax.jit(lambda a, w, b: conv2d_pallas(a, w, b, compute_dtype=jnp.float32))
    out32 = jax.block_until_ready(conv_f32(x, weight, bias))
    assert out32.shape == (N, OC, H - KH + 1, W - KW + 1), out32.shape
    assert jnp.allclose(out32, ref, atol=1e-4, rtol=1e-4)

    # default bf16-input path (f32 accumulation): looser tolerance (expected
    # bf16 rounding of inputs/weights, not a kernel bug)
    conv_bf16 = jax.jit(conv2d_pallas)
    outbf = jax.block_until_ready(conv_bf16(x, weight, bias))
    assert outbf.shape == ref.shape
    assert jnp.allclose(outbf, ref, atol=5e-2, rtol=5e-2)

    print("KERNEL_OK")
</pallas_src>

<mosaic_0001>
module attributes {stable_mosaic.version = 11 : i64} {
  func.func @kernel(%arg0: i32, %arg1: i32, %arg2: memref<1x256x24xf32, #tpu.memory_space<vmem>>, %arg3: memref<3x24x64xf32, #tpu.memory_space<vmem>>, %arg4: memref<1x64xf32, #tpu.memory_space<vmem>>, %arg5: memref<1x224x64xf32, #tpu.memory_space<vmem>>) attributes {dimension_semantics = [#tpu.dimension_semantics<parallel>, #tpu.dimension_semantics<parallel>], iteration_bounds = array<i64: 2, 1>, scalar_prefetch = 0 : i64, scratch_operands = 0 : i64, tpu.core_type = #tpu.core_type<tc>, window_params = [{transform_indices = @transform_0, window_bounds = array<i64: 1, 256, 24>}, {pipeline_mode = #tpu.pipeline_mode<synchronous>, transform_indices = @transform_1, window_bounds = array<i64: 3, 24, 64>}, {pipeline_mode = #tpu.pipeline_mode<synchronous>, transform_indices = @transform_2, window_bounds = array<i64: 1, 64>}, {transform_indices = @transform_3, window_bounds = array<i64: 1, 224, 64>}]} {
    %c224_i32 = arith.constant 224 : i32
    %0 = arith.muli %arg1, %c224_i32 : i32
    %1 = tpu.assume_multiple %0, 8 : i32
    %c0 = arith.constant 0 : index
    %c0_0 = arith.constant 0 : index
    %2 = vector.load %arg4[%c0, %c0_0] : memref<1x64xf32, #tpu.memory_space<vmem>>, vector<1x64xf32>
    %3 = vector.shape_cast %2 : vector<1x64xf32> to vector<1x64xf32>
    %4 = vector.broadcast %3 : vector<1x64xf32> to vector<224x64xf32>
    %c0_i32 = arith.constant 0 : i32
    %5 = arith.addi %1, %c0_i32 : i32
    %c0_1 = arith.constant 0 : index
    %6 = arith.index_cast %5 : i32 to index
    %c0_2 = arith.constant 0 : index
    %7 = vector.load %arg2[%c0_1, %6, %c0_2] : memref<1x256x24xf32, #tpu.memory_space<vmem>>, vector<1x224x24xf32>
    %8 = vector.shape_cast %7 : vector<1x224x24xf32> to vector<224x24xf32>
    %c0_3 = arith.constant 0 : index
    %c0_4 = arith.constant 0 : index
    %c0_5 = arith.constant 0 : index
    %9 = vector.load %arg3[%c0_3, %c0_4, %c0_5] : memref<3x24x64xf32, #tpu.memory_space<vmem>>, vector<1x24x64xf32>
    %10 = vector.shape_cast %9 : vector<1x24x64xf32> to vector<24x64xf32>
    %cst = arith.constant dense<0.000000e+00> : vector<224x64xf32>
    %11 = tpu.matmul %8, %10, %cst {dimension_numbers = #tpu.dot_dimension_numbers<[1], [0], [0], [1], [0, 0, 1, 1], [], []>} : vector<224x24xf32>, vector<24x64xf32>, vector<224x64xf32> -> vector<224x64xf32>
    %12 = arith.addf %4, %11 : vector<224x64xf32>
    %c16_i32 = arith.constant 16 : i32
    %13 = arith.addi %1, %c16_i32 : i32
    %c0_6 = arith.constant 0 : index
    %14 = arith.index_cast %13 : i32 to index
    %c0_7 = arith.constant 0 : index
    %15 = vector.load %arg2[%c0_6, %14, %c0_7] : memref<1x256x24xf32, #tpu.memory_space<vmem>>, vector<1x224x24xf32>
    %16 = vector.shape_cast %15 : vector<1x224x24xf32> to vector<224x24xf32>
    %c1 = arith.constant 1 : index
    %c0_8 = arith.constant 0 : index
    %c0_9 = arith.constant 0 : index
    %17 = vector.load %arg3[%c1, %c0_8, %c0_9] : memref<3x24x64xf32, #tpu.memory_space<vmem>>, vector<1x24x64xf32>
    %18 = vector.shape_cast %17 : vector<1x24x64xf32> to vector<24x64xf32>
    %cst_10 = arith.constant dense<0.000000e+00> : vector<224x64xf32>
    %19 = tpu.matmul %16, %18, %cst_10 {dimension_numbers = #tpu.dot_dimension_numbers<[1], [0], [0], [1], [0, 0, 1, 1], [], []>} : vector<224x24xf32>, vector<24x64xf32>, vector<224x64xf32> -> vector<224x64xf32>
    %20 = arith.addf %12, %19 : vector<224x64xf32>
    %c32_i32 = arith.constant 32 : i32
    %21 = arith.addi %1, %c32_i32 : i32
    %c0_11 = arith.constant 0 : index
    %22 = arith.index_cast %21 : i32 to index
    %c0_12 = arith.constant 0 : index
    %23 = vector.load %arg2[%c0_11, %22, %c0_12] : memref<1x256x24xf32, #tpu.memory_space<vmem>>, vector<1x224x24xf32>
    %24 = vector.shape_cast %23 : vector<1x224x24xf32> to vector<224x24xf32>
    %c2 = arith.constant 2 : index
    %c0_13 = arith.constant 0 : index
    %c0_14 = arith.constant 0 : index
    %25 = vector.load %arg3[%c2, %c0_13, %c0_14] : memref<3x24x64xf32, #tpu.memory_space<vmem>>, vector<1x24x64xf32>
    %26 = vector.shape_cast %25 : vector<1x24x64xf32> to vector<24x64xf32>
    %cst_15 = arith.constant dense<0.000000e+00> : vector<224x64xf32>
    %27 = tpu.matmul %24, %26, %cst_15 {dimension_numbers = #tpu.dot_dimension_numbers<[1], [0], [0], [1], [0, 0, 1, 1], [], []>} : vector<224x24xf32>, vector<24x64xf32>, vector<224x64xf32> -> vector<224x64xf32>
    %28 = arith.addf %20, %27 : vector<224x64xf32>
    %c0_16 = arith.constant 0 : index
    %c0_17 = arith.constant 0 : index
    %c0_18 = arith.constant 0 : index
    %29 = vector.load %arg5[%c0_16, %c0_17, %c0_18] : memref<1x224x64xf32, #tpu.memory_space<vmem>>, vector<1x224x64xf32>
    %30 = vector.shape_cast %29 : vector<1x224x64xf32> to vector<224x64xf32>
    %31 = vector.shape_cast %28 : vector<224x64xf32> to vector<1x224x64xf32>
    tpu.vector_store %arg5[%c0_16, %c0_17, %c0_18], %31 {strides = array<i32>} : memref<1x224x64xf32, #tpu.memory_space<vmem>>, vector<1x224x64xf32>,
    return
  }
  func.func @transform_0(%arg0: i32, %arg1: i32) -> (i32, i32, i32) {
    %c0_i32 = arith.constant 0 : i32
    %c0_i32_0 = arith.constant 0 : i32
    %c0_i32_1 = arith.constant 0 : i32
    return %arg0, %c0_i32, %c0_i32_0 : i32, i32, i32
  }
  func.func @transform_1(%arg0: i32, %arg1: i32) -> (i32, i32, i32) {
    %c0_i32 = arith.constant 0 : i32
    %c0_i32_0 = arith.constant 0 : i32
    %c0_i32_1 = arith.constant 0 : i32
    %c0_i32_2 = arith.constant 0 : i32
    return %c0_i32, %c0_i32_0, %c0_i32_1 : i32, i32, i32
  }
  func.func @transform_2(%arg0: i32, %arg1: i32) -> (i32, i32) {
    %c0_i32 = arith.constant 0 : i32
    %c0_i32_0 = arith.constant 0 : i32
    %c0_i32_1 = arith.constant 0 : i32
    return %c0_i32, %c0_i32_0 : i32, i32
  }
  func.func @transform_3(%arg0: i32, %arg1: i32) -> (i32, i32, i32) {
    %c0_i32 = arith.constant 0 : i32
    %c0_i32_0 = arith.constant 0 : i32
    return %arg0, %arg1, %c0_i32 : i32, i32, i32
  }
}

</mosaic_0001>

<llo_original>
// kernel: _lambda_.1
$region0: #{_lambda_.1}
  #allocation0 [shape = 'u32[]', space=smem, size = 0x4, offset = 0x4, fixed_abs, tag = 'smem constant byte address 0x4 - core index']
  #allocation1 [shape = 'u32[72,128]{1,0:T(1,128)}', space=vmem, size = 0x9000, scoped, tag = 'internal scratch']
  %s0 = inlined_call_operand.vmem [shape: f32[2,256,24], index: 0, kind: input, shape index: {}]
  %s1 = inlined_call_operand.vmem [shape: f32[3,24,64], index: 1, kind: input, shape index: {}]
  %s2 = inlined_call_operand.vmem [shape: f32[1,64], index: 2, kind: input, shape index: {}]
  %s3 = inlined_call_operand.vmem [shape: f32[2,224,64], index: 3, kind: output, shape index: {}]
  %s4 = sld [smem:[#allocation0]]
  $region45: #{_lambda_.1} parent=0
    _
  %s6 = ssub.s32 1, %s4
  %s7 = scalar_select 0, %s6, %s4
  loop: start=0, step=1, limit=4
  $region2: #{_lambda_.1} parent=0 // loop_pre_header
    _
  $region3: #{_lambda_.1} parent=0 // loop_header
    %s9 = sphi 0, %s13
    %p10 = scmp.ge.s32.totalorder %s9, 4
    %s16 = sphi 0, %s28
    %s17 = sphi 0, %s24
    %s18 = sphi 0, %s16
    %s19 = sphi 0, %s17
    %s20 = sphi 0, %s18
    %s21 = sphi 0, %s19
    %s31 = sphi 0, %s33
    %s34 = sphi 0, %s31
    %s35 = sphi 0, %s34
    %s51 = sphi 0, %s35
    %s55 = sphi 0, %s55
    %s57 = sphi 0, %s55
    %s58 = sphi 0, %s57
    %s72 = sphi 0, %s58
    %s76 = sphi 0, %s76
    %s78 = sphi 0, %s76
    %s79 = sphi 0, %s78
    %s93 = sphi 0, %s79
    %s101 = sphi 0, %s103
    %s104 = sphi 0, %s101
    %s105 = sphi 0, %s104
    %s121 = sphi 0, %s105
  $region4: #{_lambda_.1} parent=0 // loop_header_branch
    %12 = sbr.rel (%p10) target = $region8
  $region5: #{_lambda_.1} parent=0 // loop_body
    %s14 = ssub.s32 %s9, 1
    %s15 = ssub.s32 %s9, 2
    %s22 = sadd.s32 1, %s17
    %p23 = scmp.ge.s32.totalorder %s22, 1
    %s24 = scalar_select %p23, 0, %s22
    %s25 = sadd.s32 1, %s16
    %s26 = scalar_select %p23, %s25, %s16
    %p27 = scmp.ge.s32.totalorder %s26, 2
    %s28 = scalar_select %p27, 0, %s26
    %s29 = ssub.s32 %s16, %s28
    %p30 = scmp.eq.s32.totalorder %s29, 0
    %s32 = sadd.s32 %s31, 1
    %s33 = scalar_select %p30, %s31, %s32
    %p36 = pneg %p30
    %p37 = scmp.eq.s32.totalorder %s9, 1
    %p38 = por %p36, %p37
    %p39 = scmp.ne.s32.totalorder %s31, %s34
    %p40 = scmp.eq.s32.totalorder %s9, 0
    %p41 = por %p39, %p40
    %p42 = scmp.ne.s32.totalorder %s31, %s34
    %p43 = scmp.eq.s32.totalorder %s14, 1
    %p44 = por %p42, %p43
    %p45 = scmp.ne.s32.totalorder %s34, %s35
    %p46 = scmp.eq.s32.totalorder %s14, 0
    %p47 = por %p45, %p46
    %p48 = scmp.ne.s32.totalorder %s34, %s35
    %p49 = scmp.eq.s32.totalorder %s15, 1
    %p50 = por %p48, %p49
    %p52 = scmp.ne.s32.totalorder %s35, %s51
    %p53 = scmp.eq.s32.totalorder %s15, 0
    %p54 = por %p52, %p53
    %s56 = sadd.s32 %s55, 1
    %p59 = scmp.eq.s32.totalorder %s9, 1
    %p60 = scmp.ne.s32.totalorder %s55, %s57
    %p61 = scmp.eq.s32.totalorder %s9, 0
    %p62 = por %p60, %p61
    %p63 = scmp.ne.s32.totalorder %s55, %s57
    %p64 = scmp.eq.s32.totalorder %s14, 1
    %p65 = por %p63, %p64
    %p66 = scmp.ne.s32.totalorder %s57, %s58
    %p67 = scmp.eq.s32.totalorder %s14, 0
    %p68 = por %p66, %p67
    %p69 = scmp.ne.s32.totalorder %s57, %s58
    %p70 = scmp.eq.s32.totalorder %s15, 1
    %p71 = por %p69, %p70
    %p73 = scmp.ne.s32.totalorder %s58, %s72
    %p74 = scmp.eq.s32.totalorder %s15, 0
    %p75 = por %p73, %p74
    %s77 = sadd.s32 %s76, 1
    %p80 = scmp.eq.s32.totalorder %s9, 1
    %p81 = scmp.ne.s32.totalorder %s76, %s78
    %p82 = scmp.eq.s32.totalorder %s9, 0
    %p83 = por %p81, %p82
    %p84 = scmp.ne.s32.totalorder %s76, %s78
    %p85 = scmp.eq.s32.totalorder %s14, 1
    %p86 = por %p84, %p85
    %p87 = scmp.ne.s32.totalorder %s78, %s79
    %p88 = scmp.eq.s32.totalorder %s14, 0
    %p89 = por %p87, %p88
    %p90 = scmp.ne.s32.totalorder %s78, %s79
    %p91 = scmp.eq.s32.totalorder %s15, 1
    %p92 = por %p90, %p91
    %p94 = scmp.ne.s32.totalorder %s79, %s93
    %p95 = scmp.eq.s32.totalorder %s15, 0
    %p96 = por %p94, %p95
    %s97 = ssub.s32 %s16, %s28
    %s98 = ssub.s32 %s17, %s24
    %s99 = sor.u32 %s97, %s98
    %p100 = scmp.eq.s32.totalorder %s99, 0
    %s102 = sadd.s32 %s101, 1
    %s103 = scalar_select %p100, %s101, %s102
    %p106 = pneg %p100
    %p107 = scmp.eq.s32.totalorder %s9, 1
    %p108 = por %p106, %p107
    %p109 = scmp.ne.s32.totalorder %s101, %s104
    %p110 = scmp.eq.s32.totalorder %s9, 0
    %p111 = por %p109, %p110
    %p112 = scmp.ne.s32.totalorder %s101, %s104
    %p113 = scmp.eq.s32.totalorder %s14, 1
    %p114 = por %p112, %p113
    %p115 = scmp.ne.s32.totalorder %s104, %s105
    %p116 = scmp.eq.s32.totalorder %s14, 0
    %p117 = por %p115, %p116
    %p118 = scmp.ne.s32.totalorder %s104, %s105
    %p119 = scmp.eq.s32.totalorder %s15, 1
    %p120 = por %p118, %p119
    %p122 = scmp.ne.s32.totalorder %s105, %s121
    %p123 = scmp.eq.s32.totalorder %s15, 0
    %p124 = por %p122, %p123
    %p125 = scmp.le.s32.totalorder 1, %s9
    %p126 = scmp.lt.s32.totalorder %s9, 3
    %p127 = pnand %p125, %p126
    %p128 = pneg %p127
    // Predicated region
    $region9: #{_lambda_.1} parent=5 // pred_check
      _
    $region10: #{_lambda_.1} parent=5 // pred_check_branch
      %130 = sbr.rel (%p127) target = $region12
    $region11: #{_lambda_.1} parent=5 // pred_region
      %s131 = ssub.s32 %s9, 1
      // Predicated region
      $region13: #{_lambda_.1} parent=11 // pred_check
        %p132 = pneg %p68
      $region14: #{_lambda_.1} parent=11 // pred_check_branch
        %134 = sbr.rel (%p132) target = $region16
      $region15: #{_lambda_.1} parent=11 // pred_region
        _
      $region16: #{_lambda_.1} parent=11 // pred_fallthru
        _
      // Predicated region
      $region17: #{_lambda_.1} parent=11 // pred_check
        %p135 = pneg %p89
      $region18: #{_lambda_.1} parent=11 // pred_check_branch
        %137 = sbr.rel (%p135) target = $region20
      $region19: #{_lambda_.1} parent=11 // pred_region
        _
      $region20: #{_lambda_.1} parent=11 // pred_fallthru
        _
    $region12: #{_lambda_.1} parent=5 // pred_fallthru
      _
    %p138 = scmp.lt.s32.totalorder %s9, 2
    // Predicated region
    $region21: #{_lambda_.1} parent=5 // pred_check
      %p139 = pneg %p138
    $region22: #{_lambda_.1} parent=5 // pred_check_branch
      %141 = sbr.rel (%p139) target = $region24
    $region23: #{_lambda_.1} parent=5 // pred_region
      // Predicated region
      $region25: #{_lambda_.1} parent=23 // pred_check
        %p142 = pneg %p41
      $region26: #{_lambda_.1} parent=23 // pred_check_branch
        %144 = sbr.rel (%p142) target = $region28
      $region27: #{_lambda_.1} parent=23 // pred_region
        %p145 = scmp.lt.s32.totalorder %s16, 1
        %s146 = scalar_select %p145, %s16, 1
        %s147 = smul.addr %s146, 32
        %s148 = smul.addr %s147, 8
        %s149 = scalar_lea.vmem %s0, %s148
      $region28: #{_lambda_.1} parent=23 // pred_fallthru
        _
    $region24: #{_lambda_.1} parent=5 // pred_fallthru
      _
    %p150 = scmp.le.s32.totalorder 1, %s9
    %p151 = scmp.lt.s32.totalorder %s9, 3
    %p152 = pnand %p150, %p151
    %p153 = pneg %p152
    // Predicated region
    $region29: #{_lambda_.1} parent=5 // pred_check
      _
    $region30: #{_lambda_.1} parent=5 // pred_check_branch
      %155 = sbr.rel (%p152) target = $region32
    $region31: #{_lambda_.1} parent=5 // pred_region
      %s156 = ssub.s32 %s9, 1
      %p157 = scmp.lt.s32.totalorder %s18, 1
      %s158 = scalar_select %p157, %s18, 1
      %s159 = smul.addr %s158, 32
      %s160 = smul.addr %s159, 8
      %s161 = scalar_lea.vmem %s0, %s160
      %p162 = pneg %p47
      %p163 = pneg %p44
      %p164 = pneg %p68
      %p165 = pneg %p65
      %p166 = pneg %p89
      %p167 = pneg %p86
      %p168 = pneg %p117
      %p169 = pneg %p114
      %s170 = smul.u32 28, %s19
      %p171 = scmp.lt.s32.totalorder %s18, 1
      %s172 = scalar_select %p171, %s18, 1
      %p173 = scmp.lt.s32.totalorder %s170, 27
      %s174 = scalar_select %p173, %s170, 27
      %s175 = smul.addr %s172, 28
      %s176 = sadd.s32 %s174, %s175
      %s177 = smul.addr %s176, 8
      %s178 = scalar_lea.vmem %s3, %s177
      %p179 = scmp.lt.s32.totalorder %s18, 1
      %s180 = scalar_select %p179, %s18, 1
      %s181 = smul.addr %s180, 32
      %s182 = smul.addr %s181, 8
      %s183 = scalar_lea.vmem %s0, %s182
      %s184 = smul.u32 28, %s19
      %p185 = scmp.lt.s32.totalorder %s18, 1
      %s186 = scalar_select %p185, %s18, 1
      %p187 = scmp.lt.s32.totalorder %s184, 27
      %s188 = scalar_select %p187, %s184, 27
      %s189 = smul.addr %s186, 28
      %s190 = sadd.s32 %s188, %s189
      %s191 = smul.addr %s190, 8
      %s192 = scalar_lea.vmem %s3, %s191
      %s193 = smul.u32 28, %s19
      %s194 = smul.u32 %s19, 224
      %v195 = vld [vmem:[%s2] sm:$0x1]
      %v197 = vperm.slane %v195, 0
      %s199 = scalar_lea.vmem %s183, %s194
      %v200 = vld [vmem:[%s199] sm:$0xff]
      %v201 = vld [vmem:[%s199 + $0x8] sm:$0xff]
      %v202 = vld [vmem:[%s199 + $0x10] sm:$0xff]
      %v203 = vld [vmem:[%s199 + $0x18] sm:$0xff]
      %v204 = vld [vmem:[%s199 + $0x20] sm:$0xff]
      %v205 = vld [vmem:[%s199 + $0x28] sm:$0xff]
      %v206 = vld [vmem:[%s199 + $0x30] sm:$0xff]
      %v207 = vld [vmem:[%s199 + $0x38] sm:$0xff]
      %v208 = vld [vmem:[%s199 + $0x40] sm:$0xff]
      %v209 = vld [vmem:[%s199 + $0x48] sm:$0xff]
      %v210 = vld [vmem:[%s199 + $0x50] sm:$0xff]
      %v211 = vld [vmem:[%s199 + $0x58] sm:$0xff]
      %v212 = vld [vmem:[%s199 + $0x60] sm:$0xff]
      %v213 = vld [vmem:[%s199 + $0x68] sm:$0xff]
      %v214 = vld [vmem:[%s199 + $0x70] sm:$0xff]
      %v215 = vld [vmem:[%s199 + $0x78] sm:$0xff]
      %v216 = vld [vmem:[%s199 + $0x80] sm:$0xff]
      %v217 = vld [vmem:[%s199 + $0x88] sm:$0xff]
      %v218 = vld [vmem:[%s199 + $0x90] sm:$0xff]
      %v219 = vld [vmem:[%s199 + $0x98] sm:$0xff]
      %v220 = vld [vmem:[%s199 + $0xa0] sm:$0xff]
      %v221 = vld [vmem:[%s199 + $0xa8] sm:$0xff]
      %v222 = vld [vmem:[%s199 + $0xb0] sm:$0xff]
      %v223 = vld [vmem:[%s199 + $0xb8] sm:$0xff]
      %v224 = vld [vmem:[%s199 + $0xc0] sm:$0xff]
      %v225 = vld [vmem:[%s199 + $0xc8] sm:$0xff]
      %v226 = vld [vmem:[%s199 + $0xd0] sm:$0xff]
      %v227 = vld [vmem:[%s199 + $0xd8] sm:$0xff]
      %v228 = vld [vmem:[%s1] sm:$0xff]
      %v229 = vld [vmem:[%s1 + $0x8] sm:$0xff]
      %v230 = vld [vmem:[%s1 + $0x10] sm:$0xff]
      %vm231 = vcmask 195584
      %v233 = vsel %vm231, %v200, 0
      %v236 = vsel %vm231, %v201, 0
      %v239 = vsel %vm231, %v202, 0
      %v242 = vsel %vm231, %v203, 0
      %v245 = vsel %vm231, %v204, 0
      %v248 = vsel %vm231, %v205, 0
      %v251 = vsel %vm231, %v206, 0
      %v254 = vsel %vm231, %v207, 0
      %v257 = vsel %vm231, %v208, 0
      %v260 = vsel %vm231, %v209, 0
      %v263 = vsel %vm231, %v210, 0
      %v266 = vsel %vm231, %v211, 0
      %v269 = vsel %vm231, %v212, 0
      %v272 = vsel %vm231, %v213, 0
      %v275 = vsel %vm231, %v214, 0
      %v278 = vsel %vm231, %v215, 0
      %v281 = vsel %vm231, %v216, 0
      %v284 = vsel %vm231, %v217, 0
      %v287 = vsel %vm231, %v218, 0
      %v290 = vsel %vm231, %v219, 0
      %v293 = vsel %vm231, %v220, 0
      %v296 = vsel %vm231, %v221, 0
      %v299 = vsel %vm231, %v222, 0
      %v302 = vsel %vm231, %v223, 0
      %v305 = vsel %vm231, %v224, 0
      %v308 = vsel %vm231, %v225, 0
      %v311 = vsel %vm231, %v226, 0
      %v314 = vsel %vm231, %v227, 0
      %316 = vmatpush.msra.mxu0 0.0
      %317 = vmatpush.msra.mxu0 0.0
      %318 = vmatpush.msra.mxu0 0.0
      %319 = vmatpush.msra.mxu0 0.0
      %320 = vmatpush.msra.mxu0 0.0
      %321 = vmatpush.msra.mxu0 0.0
      %322 = vmatpush.msra.mxu0 0.0
      %323 = vmatpush.msra.mxu0 0.0
      %324 = vmatpush.msra.mxu0 0.0
      %325 = vmatpush.msra.mxu0 0.0
      %326 = vmatpush.msra.mxu0 0.0
      %327 = vmatpush.msra.mxu0 0.0
      %328 = vmatpush.msra.mxu0 0.0
      %329 = vmatpush.msra.mxu0 %v230
      %330 = vmatpush.msra.mxu0 %v229
      %331 = vmatpush.msra.mxu0 %v228
      %332 = vmatmul.f32.gmra.mxu0 %v233
      %v333 = vpop.f32.mrf.mxu0
      %v334 = vadd.f32 0.0, %v333
      %335 = vmatmul.f32.gmra.mxu0 %v236
      %v336 = vpop.f32.mrf.mxu0
      %v337 = vadd.f32 0.0, %v336
      %338 = vmatmul.f32.gmra.mxu0 %v239
      %v339 = vpop.f32.mrf.mxu0
      %v340 = vadd.f32 0.0, %v339
      %341 = vmatmul.f32.gmra.mxu0 %v242
      %v342 = vpop.f32.mrf.mxu0
      %v343 = vadd.f32 0.0, %v342
      %344 = vmatmul.f32.gmra.mxu0 %v245
      %v345 = vpop.f32.mrf.mxu0
      %v346 = vadd.f32 0.0, %v345
      %347 = vmatmul.f32.gmra.mxu0 %v248
      %v348 = vpop.f32.mrf.mxu0
      %v349 = vadd.f32 0.0, %v348
      %350 = vmatmul.f32.gmra.mxu0 %v251
      %v351 = vpop.f32.mrf.mxu0
      %v352 = vadd.f32 0.0, %v351
      %353 = vmatmul.f32.gmra.mxu0 %v254
      %v354 = vpop.f32.mrf.mxu0
      %v355 = vadd.f32 0.0, %v354
      %356 = vmatmul.f32.gmra.mxu0 %v257
      %v357 = vpop.f32.mrf.mxu0
      %v358 = vadd.f32 0.0, %v357
      %359 = vmatmul.f32.gmra.mxu0 %v260
      %v360 = vpop.f32.mrf.mxu0
      %v361 = vadd.f32 0.0, %v360
      %362 = vmatmul.f32.gmra.mxu0 %v263
      %v363 = vpop.f32.mrf.mxu0
      %v364 = vadd.f32 0.0, %v363
      %365 = vmatmul.f32.gmra.mxu0 %v266
      %v366 = vpop.f32.mrf.mxu0
      %v367 = vadd.f32 0.0, %v366
      %368 = vmatmul.f32.gmra.mxu0 %v269
      %v369 = vpop.f32.mrf.mxu0
      %v370 = vadd.f32 0.0, %v369
      %371 = vmatmul.f32.gmra.mxu0 %v272
      %v372 = vpop.f32.mrf.mxu0
      %v373 = vadd.f32 0.0, %v372
      %374 = vmatmul.f32.gmra.mxu0 %v275
      %v375 = vpop.f32.mrf.mxu0
      %v376 = vadd.f32 0.0, %v375
      %377 = vmatmul.f32.gmra.mxu0 %v278
      %v378 = vpop.f32.mrf.mxu0
      %v379 = vadd.f32 0.0, %v378
      %380 = vmatmul.f32.gmra.mxu0 %v281
      %v381 = vpop.f32.mrf.mxu0
      %v382 = vadd.f32 0.0, %v381
      %383 = vmatmul.f32.gmra.mxu0 %v284
      %v384 = vpop.f32.mrf.mxu0
      %v385 = vadd.f32 0.0, %v384
      %386 = vmatmul.f32.gmra.mxu0 %v287
      %v387 = vpop.f32.mrf.mxu0
      %v388 = vadd.f32 0.0, %v387
      %389 = vmatmul.f32.gmra.mxu0 %v290
      %v390 = vpop.f32.mrf.mxu0
      %v391 = vadd.f32 0.0, %v390
      %392 = vmatmul.f32.gmra.mxu0 %v293
      %v393 = vpop.f32.mrf.mxu0
      %v394 = vadd.f32 0.0, %v393
      %395 = vmatmul.f32.gmra.mxu0 %v296
      %v396 = vpop.f32.mrf.mxu0
      %v397 = vadd.f32 0.0, %v396
      %398 = vmatmul.f32.gmra.mxu0 %v299
      %v399 = vpop.f32.mrf.mxu0
      %v400 = vadd.f32 0.0, %v399
      %401 = vmatmul.f32.gmra.mxu0 %v302
      %v402 = vpop.f32.mrf.mxu0
      %v403 = vadd.f32 0.0, %v402
      %404 = vmatmul.f32.gmra.mxu0 %v305
      %v405 = vpop.f32.mrf.mxu0
      %v406 = vadd.f32 0.0, %v405
      %407 = vmatmul.f32.gmra.mxu0 %v308
      %v408 = vpop.f32.mrf.mxu0
      %v409 = vadd.f32 0.0, %v408
      %410 = vmatmul.f32.gmra.mxu0 %v311
      %v411 = vpop.f32.mrf.mxu0
      %v412 = vadd.f32 0.0, %v411
      %413 = vmatmul.f32.gmra.mxu0 %v314
      %v414 = vpop.f32.mrf.mxu0
      %v415 = vadd.f32 0.0, %v414
      %416 = vdwg.mxu0
      %v417 = vadd.f32 %v197, %v334
      %v418 = vadd.f32 %v197, %v337
      %v419 = vadd.f32 %v197, %v340
      %v420 = vadd.f32 %v197, %v343
      %v421 = vadd.f32 %v197, %v346
      %v422 = vadd.f32 %v197, %v349
      %v423 = vadd.f32 %v197, %v352
      %v424 = vadd.f32 %v197, %v355
      %v425 = vadd.f32 %v197, %v358
      %v426 = vadd.f32 %v197, %v361
      %v427 = vadd.f32 %v197, %v364
      %v428 = vadd.f32 %v197, %v367
      %v429 = vadd.f32 %v197, %v370
      %v430 = vadd.f32 %v197, %v373
      %v431 = vadd.f32 %v197, %v376
      %v432 = vadd.f32 %v197, %v379
      %v433 = vadd.f32 %v197, %v382
      %v434 = vadd.f32 %v197, %v385
      %v435 = vadd.f32 %v197, %v388
      %v436 = vadd.f32 %v197, %v391
      %v437 = vadd.f32 %v197, %v394
      %v438 = vadd.f32 %v197, %v397
      %v439 = vadd.f32 %v197, %v400
      %v440 = vadd.f32 %v197, %v403
      %v441 = vadd.f32 %v197, %v406
      %v442 = vadd.f32 %v197, %v409
      %v443 = vadd.f32 %v197, %v412
      %v444 = vadd.f32 %v197, %v415
      %s445 = sadd.s32 %s194, 16
      %s446 = scalar_lea.vmem %s183, %s445
      %v447 = vld [vmem:[%s446] sm:$0xff]
      %v448 = vld [vmem:[%s446 + $0x8] sm:$0xff]
      %v449 = vld [vmem:[%s446 + $0x10] sm:$0xff]
      %v450 = vld [vmem:[%s446 + $0x18] sm:$0xff]
      %v451 = vld [vmem:[%s446 + $0x20] sm:$0xff]
      %v452 = vld [vmem:[%s446 + $0x28] sm:$0xff]
      %v453 = vld [vmem:[%s446 + $0x30] sm:$0xff]
      %v454 = vld [vmem:[%s446 + $0x38] sm:$0xff]
      %v455 = vld [vmem:[%s446 + $0x40] sm:$0xff]
      %v456 = vld [vmem:[%s446 + $0x48] sm:$0xff]
      %v457 = vld [vmem:[%s446 + $0x50] sm:$0xff]
      %v458 = vld [vmem:[%s446 + $0x58] sm:$0xff]
      %v459 = vld [vmem:[%s446 + $0x60] sm:$0xff]
      %v460 = vld [vmem:[%s446 + $0x68] sm:$0xff]
      %v461 = vld [vmem:[%s446 + $0x70] sm:$0xff]
      %v462 = vld [vmem:[%s446 + $0x78] sm:$0xff]
      %v463 = vld [vmem:[%s446 + $0x80] sm:$0xff]
      %v464 = vld [vmem:[%s446 + $0x88] sm:$0xff]
      %v465 = vld [vmem:[%s446 + $0x90] sm:$0xff]
      %v466 = vld [vmem:[%s446 + $0x98] sm:$0xff]
      %v467 = vld [vmem:[%s446 + $0xa0] sm:$0xff]
      %v468 = vld [vmem:[%s446 + $0xa8] sm:$0xff]
      %v469 = vld [vmem:[%s446 + $0xb0] sm:$0xff]
      %v470 = vld [vmem:[%s446 + $0xb8] sm:$0xff]
      %v471 = vld [vmem:[%s446 + $0xc0] sm:$0xff]
      %v472 = vld [vmem:[%s446 + $0xc8] sm:$0xff]
      %v473 = vld [vmem:[%s446 + $0xd0] sm:$0xff]
      %v474 = vld [vmem:[%s446 + $0xd8] sm:$0xff]
      %s475 = scalar_lea.vmem %s1, 24
      %v476 = vld [vmem:[%s475] sm:$0xff]
      %v477 = vld [vmem:[%s475 + $0x8] sm:$0xff]
      %v478 = vld [vmem:[%s475 + $0x10] sm:$0xff]
      %v480 = vsel %vm231, %v447, 0
      %v483 = vsel %vm231, %v448, 0
      %v486 = vsel %vm231, %v449, 0
      %v489 = vsel %vm231, %v450, 0
      %v492 = vsel %vm231, %v451, 0
      %v495 = vsel %vm231, %v452, 0
      %v498 = vsel %vm231, %v453, 0
      %v501 = vsel %vm231, %v454, 0
      %v504 = vsel %vm231, %v455, 0
      %v507 = vsel %vm231, %v456, 0
      %v510 = vsel %vm231, %v457, 0
      %v513 = vsel %vm231, %v458, 0
      %v516 = vsel %vm231, %v459, 0
      %v519 = vsel %vm231, %v460, 0
      %v522 = vsel %vm231, %v461, 0
      %v525 = vsel %vm231, %v462, 0
      %v528 = vsel %vm231, %v463, 0
      %v531 = vsel %vm231, %v464, 0
      %v534 = vsel %vm231, %v465, 0
      %v537 = vsel %vm231, %v466, 0
      %v540 = vsel %vm231, %v467, 0
      %v543 = vsel %vm231, %v468, 0
      %v546 = vsel %vm231, %v469, 0
      %v549 = vsel %vm231, %v470, 0
      %v552 = vsel %vm231, %v471, 0
      %v555 = vsel %vm231, %v472, 0
      %v558 = vsel %vm231, %v473, 0
      %v561 = vsel %vm231, %v474, 0
      %563 = vmatpush.msra.mxu0 0.0
      %564 = vmatpush.msra.mxu0 0.0
      %565 = vmatpush.msra.mxu0 0.0
      %566 = vmatpush.msra.mxu0 0.0
      %567 = vmatpush.msra.mxu0 0.0
      %568 = vmatpush.msra.mxu0 0.0
      %569 = vmatpush.msra.mxu0 0.0
      %570 = vmatpush.msra.mxu0 0.0
      %571 = vmatpush.msra.mxu0 0.0
      %572 = vmatpush.msra.mxu0 0.0
      %573 = vmatpush.msra.mxu0 0.0
      %574 = vmatpush.msra.mxu0 0.0
      %575 = vmatpush.msra.mxu0 0.0
      %576 = vmatpush.msra.mxu0 %v478
      %577 = vmatpush.msra.mxu0 %v477
      %578 = vmatpush.msra.mxu0 %v476
      %579 = vmatmul.f32.gmra.mxu0 %v480
      %v580 = vpop.f32.mrf.mxu0
      %v581 = vadd.f32 0.0, %v580
      %582 = vmatmul.f32.gmra.mxu0 %v483
      %v583 = vpop.f32.mrf.mxu0
      %v584 = vadd.f32 0.0, %v583
      %585 = vmatmul.f32.gmra.mxu0 %v486
      %v586 = vpop.f32.mrf.mxu0
      %v587 = vadd.f32 0.0, %v586
      %588 = vmatmul.f32.gmra.mxu0 %v489
      %v589 = vpop.f32.mrf.mxu0
      %v590 = vadd.f32 0.0, %v589
      %591 = vmatmul.f32.gmra.mxu0 %v492
      %v592 = vpop.f32.mrf.mxu0
      %v593 = vadd.f32 0.0, %v592
      %594 = vmatmul.f32.gmra.mxu0 %v495
      %v595 = vpop.f32.mrf.mxu0
      %v596 = vadd.f32 0.0, %v595
      %597 = vmatmul.f32.gmra.mxu0 %v498
      %v598 = vpop.f32.mrf.mxu0
      %v599 = vadd.f32 0.0, %v598
      %600 = vmatmul.f32.gmra.mxu0 %v501
      %v601 = vpop.f32.mrf.mxu0
      %v602 = vadd.f32 0.0, %v601
      %603 = vmatmul.f32.gmra.mxu0 %v504
      %v604 = vpop.f32.mrf.mxu0
      %v605 = vadd.f32 0.0, %v604
      %606 = vmatmul.f32.gmra.mxu0 %v507
      %v607 = vpop.f32.mrf.mxu0
      %v608 = vadd.f32 0.0, %v607
      %609 = vmatmul.f32.gmra.mxu0 %v510
      %v610 = vpop.f32.mrf.mxu0
      %v611 = vadd.f32 0.0, %v610
      %612 = vmatmul.f32.gmra.mxu0 %v513
      %v613 = vpop.f32.mrf.mxu0
      %v614 = vadd.f32 0.0, %v613
      %615 = vmatmul.f32.gmra.mxu0 %v516
      %v616 = vpop.f32.mrf.mxu0
      %v617 = vadd.f32 0.0, %v616
      %618 = vmatmul.f32.gmra.mxu0 %v519
      %v619 = vpop.f32.mrf.mxu0
      %v620 = vadd.f32 0.0, %v619
      %621 = vmatmul.f32.gmra.mxu0 %v522
      %v622 = vpop.f32.mrf.mxu0
      %v623 = vadd.f32 0.0, %v622
      %624 = vmatmul.f32.gmra.mxu0 %v525
      %v625 = vpop.f32.mrf.mxu0
      %v626 = vadd.f32 0.0, %v625
      %627 = vmatmul.f32.gmra.mxu0 %v528
      %v628 = vpop.f32.mrf.mxu0
      %v629 = vadd.f32 0.0, %v628
      %630 = vmatmul.f32.gmra.mxu0 %v531
      %v631 = vpop.f32.mrf.mxu0
      %v632 = vadd.f32 0.0, %v631
      %633 = vmatmul.f32.gmra.mxu0 %v534
      %v634 = vpop.f32.mrf.mxu0
      %v635 = vadd.f32 0.0, %v634
      %636 = vmatmul.f32.gmra.mxu0 %v537
      %v637 = vpop.f32.mrf.mxu0
      %v638 = vadd.f32 0.0, %v637
      %639 = vmatmul.f32.gmra.mxu0 %v540
      %v640 = vpop.f32.mrf.mxu0
      %v641 = vadd.f32 0.0, %v640
      %642 = vmatmul.f32.gmra.mxu0 %v543
      %v643 = vpop.f32.mrf.mxu0
      %v644 = vadd.f32 0.0, %v643
      %645 = vmatmul.f32.gmra.mxu0 %v546
      %v646 = vpop.f32.mrf.mxu0
      %v647 = vadd.f32 0.0, %v646
      %648 = vmatmul.f32.gmra.mxu0 %v549
      %v649 = vpop.f32.mrf.mxu0
      %v650 = vadd.f32 0.0, %v649
      %651 = vmatmul.f32.gmra.mxu0 %v552
      %v652 = vpop.f32.mrf.mxu0
      %v653 = vadd.f32 0.0, %v652
      %654 = vmatmul.f32.gmra.mxu0 %v555
      %v655 = vpop.f32.mrf.mxu0
      %v656 = vadd.f32 0.0, %v655
      %657 = vmatmul.f32.gmra.mxu0 %v558
      %v658 = vpop.f32.mrf.mxu0
      %v659 = vadd.f32 0.0, %v658
      %660 = vmatmul.f32.gmra.mxu0 %v561
      %v661 = vpop.f32.mrf.mxu0
      %v662 = vadd.f32 0.0, %v661
      %663 = vdwg.mxu0
      %v664 = vadd.f32 %v417, %v581
      %v665 = vadd.f32 %v418, %v584
      %v666 = vadd.f32 %v419, %v587
      %v667 = vadd.f32 %v420, %v590
      %v668 = vadd.f32 %v421, %v593
      %v669 = vadd.f32 %v422, %v596
      %v670 = vadd.f32 %v423, %v599
      %v671 = vadd.f32 %v424, %v602
      %v672 = vadd.f32 %v425, %v605
      %v673 = vadd.f32 %v426, %v608
      %v674 = vadd.f32 %v427, %v611
      %v675 = vadd.f32 %v428, %v614
      %v676 = vadd.f32 %v429, %v617
      %v677 = vadd.f32 %v430, %v620
      %v678 = vadd.f32 %v431, %v623
      %v679 = vadd.f32 %v432, %v626
      %v680 = vadd.f32 %v433, %v629
      %v681 = vadd.f32 %v434, %v632
      %v682 = vadd.f32 %v435, %v635
      %v683 = vadd.f32 %v436, %v638
      %v684 = vadd.f32 %v437, %v641
      %v685 = vadd.f32 %v438, %v644
      %v686 = vadd.f32 %v439, %v647
      %v687 = vadd.f32 %v440, %v650
      %v688 = vadd.f32 %v441, %v653
      %v689 = vadd.f32 %v442, %v656
      %v690 = vadd.f32 %v443, %v659
      %v691 = vadd.f32 %v444, %v662
      %s692 = sadd.s32 %s194, 32
      %s693 = scalar_lea.vmem %s183, %s692
      %v694 = vld [vmem:[%s693] sm:$0xff]
      %v695 = vld [vmem:[%s693 + $0x8] sm:$0xff]
      %v696 = vld [vmem:[%s693 + $0x10] sm:$0xff]
      %v697 = vld [vmem:[%s693 + $0x18] sm:$0xff]
      %v698 = vld [vmem:[%s693 + $0x20] sm:$0xff]
      %v699 = vld [vmem:[%s693 + $0x28] sm:$0xff]
      %v700 = vld [vmem:[%s693 + $0x30] sm:$0xff]
      %v701 = vld [vmem:[%s693 + $0x38] sm:$0xff]
      %v702 = vld [vmem:[%s693 + $0x40] sm:$0xff]
      %v703 = vld [vmem:[%s693 + $0x48] sm:$0xff]
      %v704 = vld [vmem:[%s693 + $0x50] sm:$0xff]
      %v705 = vld [vmem:[%s693 + $0x58] sm:$0xff]
      %v706 = vld [vmem:[%s693 + $0x60] sm:$0xff]
      %v707 = vld [vmem:[%s693 + $0x68] sm:$0xff]
      %v708 = vld [vmem:[%s693 + $0x70] sm:$0xff]
      %v709 = vld [vmem:[%s693 + $0x78] sm:$0xff]
      %v710 = vld [vmem:[%s693 + $0x80] sm:$0xff]
      %v711 = vld [vmem:[%s693 + $0x88] sm:$0xff]
      %v712 = vld [vmem:[%s693 + $0x90] sm:$0xff]
      %v713 = vld [vmem:[%s693 + $0x98] sm:$0xff]
      %v714 = vld [vmem:[%s693 + $0xa0] sm:$0xff]
      %v715 = vld [vmem:[%s693 + $0xa8] sm:$0xff]
      %v716 = vld [vmem:[%s693 + $0xb0] sm:$0xff]
      %v717 = vld [vmem:[%s693 + $0xb8] sm:$0xff]
      %v718 = vld [vmem:[%s693 + $0xc0] sm:$0xff]
      %v719 = vld [vmem:[%s693 + $0xc8] sm:$0xff]
      %v720 = vld [vmem:[%s693 + $0xd0] sm:$0xff]
      %v721 = vld [vmem:[%s693 + $0xd8] sm:$0xff]
      %s722 = scalar_lea.vmem %s1, 48
      %v723 = vld [vmem:[%s722] sm:$0xff]
      %v724 = vld [vmem:[%s722 + $0x8] sm:$0xff]
      %v725 = vld [vmem:[%s722 + $0x10] sm:$0xff]
      %v727 = vsel %vm231, %v694, 0
      %v730 = vsel %vm231, %v695, 0
      %v733 = vsel %vm231, %v696, 0
      %v736 = vsel %vm231, %v697, 0
      %v739 = vsel %vm231, %v698, 0
      %v742 = vsel %vm231, %v699, 0
      %v745 = vsel %vm231, %v700, 0
      %v748 = vsel %vm231, %v701, 0
      %v751 = vsel %vm231, %v702, 0
      %v754 = vsel %vm231, %v703, 0
      %v757 = vsel %vm231, %v704, 0
      %v760 = vsel %vm231, %v705, 0
      %v763 = vsel %vm231, %v706, 0
      %v766 = vsel %vm231, %v707, 0
      %v769 = vsel %vm231, %v708, 0
      %v772 = vsel %vm231, %v709, 0
      %v775 = vsel %vm231, %v710, 0
      %v778 = vsel %vm231, %v711, 0
      %v781 = vsel %vm231, %v712, 0
      %v784 = vsel %vm231, %v713, 0
      %v787 = vsel %vm231, %v714, 0
      %v790 = vsel %vm231, %v715, 0
      %v793 = vsel %vm231, %v716, 0
      %v796 = vsel %vm231, %v717, 0
      %v799 = vsel %vm231, %v718, 0
      %v802 = vsel %vm231, %v719, 0
      %v805 = vsel %vm231, %v720, 0
      %v808 = vsel %vm231, %v721, 0
      %810 = vmatpush.msra.mxu0 0.0
      %811 = vmatpush.msra.mxu0 0.0
      %812 = vmatpush.msra.mxu0 0.0
      %813 = vmatpush.msra.mxu0 0.0
      %814 = vmatpush.msra.mxu0 0.0
      %815 = vmatpush.msra.mxu0 0.0
      %816 = vmatpush.msra.mxu0 0.0
      %817 = vmatpush.msra.mxu0 0.0
      %818 = vmatpush.msra.mxu0 0.0
      %819 = vmatpush.msra.mxu0 0.0
      %820 = vmatpush.msra.mxu0 0.0
      %821 = vmatpush.msra.mxu0 0.0
      %822 = vmatpush.msra.mxu0 0.0
      %823 = vmatpush.msra.mxu0 %v725
      %824 = vmatpush.msra.mxu0 %v724
      %825 = vmatpush.msra.mxu0 %v723
      %826 = vmatmul.f32.gmra.mxu0 %v727
      %v827 = vpop.f32.mrf.mxu0
      %v828 = vadd.f32 0.0, %v827
      %829 = vmatmul.f32.gmra.mxu0 %v730
      %v830 = vpop.f32.mrf.mxu0
      %v831 = vadd.f32 0.0, %v830
      %832 = vmatmul.f32.gmra.mxu0 %v733
      %v833 = vpop.f32.mrf.mxu0
      %v834 = vadd.f32 0.0, %v833
      %835 = vmatmul.f32.gmra.mxu0 %v736
      %v836 = vpop.f32.mrf.mxu0
      %v837 = vadd.f32 0.0, %v836
      %838 = vmatmul.f32.gmra.mxu0 %v739
      %v839 = vpop.f32.mrf.mxu0
      %v840 = vadd.f32 0.0, %v839
      %841 = vmatmul.f32.gmra.mxu0 %v742
      %v842 = vpop.f32.mrf.mxu0
      %v843 = vadd.f32 0.0, %v842
      %844 = vmatmul.f32.gmra.mxu0 %v745
      %v845 = vpop.f32.mrf.mxu0
      %v846 = vadd.f32 0.0, %v845
      %847 = vmatmul.f32.gmra.mxu0 %v748
      %v848 = vpop.f32.mrf.mxu0
      %v849 = vadd.f32 0.0, %v848
      %850 = vmatmul.f32.gmra.mxu0 %v751
      %v851 = vpop.f32.mrf.mxu0
      %v852 = vadd.f32 0.0, %v851
      %853 = vmatmul.f32.gmra.mxu0 %v754
      %v854 = vpop.f32.mrf.mxu0
      %v855 = vadd.f32 0.0, %v854
      %856 = vmatmul.f32.gmra.mxu0 %v757
      %v857 = vpop.f32.mrf.mxu0
      %v858 = vadd.f32 0.0, %v857
      %859 = vmatmul.f32.gmra.mxu0 %v760
      %v860 = vpop.f32.mrf.mxu0
      %v861 = vadd.f32 0.0, %v860
      %862 = vmatmul.f32.gmra.mxu0 %v763
      %v863 = vpop.f32.mrf.mxu0
      %v864 = vadd.f32 0.0, %v863
      %865 = vmatmul.f32.gmra.mxu0 %v766
      %v866 = vpop.f32.mrf.mxu0
      %v867 = vadd.f32 0.0, %v866
      %868 = vmatmul.f32.gmra.mxu0 %v769
      %v869 = vpop.f32.mrf.mxu0
      %v870 = vadd.f32 0.0, %v869
      %871 = vmatmul.f32.gmra.mxu0 %v772
      %v872 = vpop.f32.mrf.mxu0
      %v873 = vadd.f32 0.0, %v872
      %874 = vmatmul.f32.gmra.mxu0 %v775
      %v875 = vpop.f32.mrf.mxu0
      %v876 = vadd.f32 0.0, %v875
      %877 = vmatmul.f32.gmra.mxu0 %v778
      %v878 = vpop.f32.mrf.mxu0
      %v879 = vadd.f32 0.0, %v878
      %880 = vmatmul.f32.gmra.mxu0 %v781
      %v881 = vpop.f32.mrf.mxu0
      %v882 = vadd.f32 0.0, %v881
      %883 = vmatmul.f32.gmra.mxu0 %v784
      %v884 = vpop.f32.mrf.mxu0
      %v885 = vadd.f32 0.0, %v884
      %886 = vmatmul.f32.gmra.mxu0 %v787
      %v887 = vpop.f32.mrf.mxu0
      %v888 = vadd.f32 0.0, %v887
      %889 = vmatmul.f32.gmra.mxu0 %v790
      %v890 = vpop.f32.mrf.mxu0
      %v891 = vadd.f32 0.0, %v890
      %892 = vmatmul.f32.gmra.mxu0 %v793
      %v893 = vpop.f32.mrf.mxu0
      %v894 = vadd.f32 0.0, %v893
      %895 = vmatmul.f32.gmra.mxu0 %v796
      %v896 = vpop.f32.mrf.mxu0
      %v897 = vadd.f32 0.0, %v896
      %898 = vmatmul.f32.gmra.mxu0 %v799
      %v899 = vpop.f32.mrf.mxu0
      %v900 = vadd.f32 0.0, %v899
      %901 = vmatmul.f32.gmra.mxu0 %v802
      %v902 = vpop.f32.mrf.mxu0
      %v903 = vadd.f32 0.0, %v902
      %904 = vmatmul.f32.gmra.mxu0 %v805
      %v905 = vpop.f32.mrf.mxu0
      %v906 = vadd.f32 0.0, %v905
      %907 = vmatmul.f32.gmra.mxu0 %v808
      %v908 = vpop.f32.mrf.mxu0
      %v909 = vadd.f32 0.0, %v908
      %910 = vdwg.mxu0
      %v911 = vadd.f32 %v664, %v828
      %v912 = vadd.f32 %v665, %v831
      %v913 = vadd.f32 %v666, %v834
      %v914 = vadd.f32 %v667, %v837
      %v915 = vadd.f32 %v668, %v840
      %v916 = vadd.f32 %v669, %v843
      %v917 = vadd.f32 %v670, %v846
      %v918 = vadd.f32 %v671, %v849
      %v919 = vadd.f32 %v672, %v852
      %v920 = vadd.f32 %v673, %v855
      %v921 = vadd.f32 %v674, %v858
      %v922 = vadd.f32 %v675, %v861
      %v923 = vadd.f32 %v676, %v864
      %v924 = vadd.f32 %v677, %v867
      %v925 = vadd.f32 %v678, %v870
      %v926 = vadd.f32 %v679, %v873
      %v927 = vadd.f32 %v680, %v876
      %v928 = vadd.f32 %v681, %v879
      %v929 = vadd.f32 %v682, %v882
      %v930 = vadd.f32 %v683, %v885
      %v931 = vadd.f32 %v684, %v888
      %v932 = vadd.f32 %v685, %v891
      %v933 = vadd.f32 %v686, %v894
      %v934 = vadd.f32 %v687, %v897
      %v935 = vadd.f32 %v688, %v900
      %v936 = vadd.f32 %v689, %v903
      %v937 = vadd.f32 %v690, %v906
      %v938 = vadd.f32 %v691, %v909
      %vm939 = vcmask 523264
      %940 = vst.msk [vmem:[%s192] sm:$0xff] %vm939, %v911
      %941 = vst.msk [vmem:[%s192 + $0x8] sm:$0xff] %vm939, %v912
      %942 = vst.msk [vmem:[%s192 + $0x10] sm:$0xff] %vm939, %v913
      %943 = vst.msk [vmem:[%s192 + $0x18] sm:$0xff] %vm939, %v914
      %944 = vst.msk [vmem:[%s192 + $0x20] sm:$0xff] %vm939, %v915
      %945 = vst.msk [vmem:[%s192 + $0x28] sm:$0xff] %vm939, %v916
      %946 = vst.msk [vmem:[%s192 + $0x30] sm:$0xff] %vm939, %v917
      %947 = vst.msk [vmem:[%s192 + $0x38] sm:$0xff] %vm939, %v918
      %948 = vst.msk [vmem:[%s192 + $0x40] sm:$0xff] %vm939, %v919
      %949 = vst.msk [vmem:[%s192 + $0x48] sm:$0xff] %vm939, %v920
      %950 = vst.msk [vmem:[%s192 + $0x50] sm:$0xff] %vm939, %v921
      %951 = vst.msk [vmem:[%s192 + $0x58] sm:$0xff] %vm939, %v922
      %952 = vst.msk [vmem:[%s192 + $0x60] sm:$0xff] %vm939, %v923
      %953 = vst.msk [vmem:[%s192 + $0x68] sm:$0xff] %vm939, %v924
      %954 = vst.msk [vmem:[%s192 + $0x70] sm:$0xff] %vm939, %v925
      %955 = vst.msk [vmem:[%s192 + $0x78] sm:$0xff] %vm939, %v926
      %956 = vst.msk [vmem:[%s192 + $0x80] sm:$0xff] %vm939, %v927
      %957 = vst.msk [vmem:[%s192 + $0x88] sm:$0xff] %vm939, %v928
      %958 = vst.msk [vmem:[%s192 + $0x90] sm:$0xff] %vm939, %v929
      %959 = vst.msk [vmem:[%s192 + $0x98] sm:$0xff] %vm939, %v930
      %960 = vst.msk [vmem:[%s192 + $0xa0] sm:$0xff] %vm939, %v931
      %961 = vst.msk [vmem:[%s192 + $0xa8] sm:$0xff] %vm939, %v932
      %962 = vst.msk [vmem:[%s192 + $0xb0] sm:$0xff] %vm939, %v933
      %963 = vst.msk [vmem:[%s192 + $0xb8] sm:$0xff] %vm939, %v934
      %964 = vst.msk [vmem:[%s192 + $0xc0] sm:$0xff] %vm939, %v935
      %965 = vst.msk [vmem:[%s192 + $0xc8] sm:$0xff] %vm939, %v936
      %966 = vst.msk [vmem:[%s192 + $0xd0] sm:$0xff] %vm939, %v937
      %967 = vst.msk [vmem:[%s192 + $0xd8] sm:$0xff] %vm939, %v938
      %s968 = smul.u32 28, %s19
      %p969 = scmp.lt.s32.totalorder %s18, 1
      %s970 = scalar_select %p969, %s18, 1
      %p971 = scmp.lt.s32.totalorder %s968, 27
      %s972 = scalar_select %p971, %s968, 27
      %s973 = smul.addr %s970, 28
      %s974 = sadd.s32 %s972, %s973
      %s975 = smul.addr %s974, 8
      %s976 = scalar_lea.vmem %s3, %s975
      // Predicated region
      $region33: #{_lambda_.1} parent=31 // pred_check
        %p977 = pneg %p114
      $region34: #{_lambda_.1} parent=31 // pred_check_branch
        %979 = sbr.rel (%p977) target = $region36
      $region35: #{_lambda_.1} parent=31 // pred_region
        %s980 = smul.u32 28, %s19
      $region36: #{_lambda_.1} parent=31 // pred_fallthru
        _
    $region32: #{_lambda_.1} parent=5 // pred_fallthru
      _
    %p981 = scmp.le.s32.totalorder 2, %s9
    // Predicated region
    $region37: #{_lambda_.1} parent=5 // pred_check
      %p982 = pneg %p981
    $region38: #{_lambda_.1} parent=5 // pred_check_branch
      %984 = sbr.rel (%p982) target = $region40
    $region39: #{_lambda_.1} parent=5 // pred_region
      %s985 = ssub.s32 %s9, 2
      // Predicated region
      $region41: #{_lambda_.1} parent=39 // pred_check
        %p986 = pneg %p120
      $region42: #{_lambda_.1} parent=39 // pred_check_branch
        %988 = sbr.rel (%p986) target = $region44
      $region43: #{_lambda_.1} parent=39 // pred_region
        %s989 = smul.u32 28, %s21
        %p990 = scmp.lt.s32.totalorder %s20, 1
        %s991 = scalar_select %p990, %s20, 1
        %p992 = scmp.lt.s32.totalorder %s989, 27
        %s993 = scalar_select %p992, %s989, 27
        %s994 = smul.addr %s991, 28
        %s995 = sadd.s32 %s993, %s994
        %s996 = smul.addr %s995, 8
        %s997 = scalar_lea.vmem %s3, %s996
      $region44: #{_lambda_.1} parent=39 // pred_fallthru
        _
    $region40: #{_lambda_.1} parent=5 // pred_fallthru
      _
  $region6: #{_lambda_.1} parent=0 // loop_footer
    %s13 = sadd.s32 1, %s9
  $region7: #{_lambda_.1} parent=0 // loop_footer_branch
    %8 = sbr.rel target = $region3
  $region8: #{_lambda_.1} parent=0 // loop_exit
    _

</llo_original>
